<compile_context>
chip_gen: v7x
topology: tpu7x:2x2x1
jax: 0.10.0
libtpu: 0.0.40
codegen_flags: <defaults>
</compile_context>

<pallas_src>
import jax
import jax.numpy as jnp
from jax.experimental import pallas as pl
from jax.experimental.pallas import tpu as pltpu


def self_attention_kernel(x_ref, w1_ref, b1_ref, w2_ref, b2_ref,
                          out_ref, weights_ref):
    tb, S, H = x_ref.shape
    P = w1_ref.shape[1]

    x = x_ref[...]                                         # (tb, S, H) f32
    x2 = x.reshape(tb * S, H)

    # ---- Linear(H, P) -> ReLU : bf16 MXU operands, f32 accumulation ---------
    h = jnp.dot(x2.astype(jnp.bfloat16), w1_ref[...].astype(jnp.bfloat16),
                preferred_element_type=jnp.float32) + b1_ref[...]   # (tb*S, P)
    h = jnp.maximum(h, 0.0)                                # ReLU(inplace=True)

    # ---- Linear(P, 1): VPU multiply + lane reduce (no N=1 MXU matmul) -------
    # w2_ref is the (1, P) row; energies come out directly in (tb, S) layout.
    energy = jnp.sum((h * w2_ref[...]).reshape(tb, S, P), axis=-1) + b2_ref[0, 0]

    # ---- softmax over the sequence dimension (dim=1), all-f32 stats ---------
    m = jnp.max(energy, axis=1, keepdims=True)
    ex = jnp.exp(energy - m)
    denom = jnp.sum(ex, axis=1, keepdims=True)             # (tb, 1)
    # Exact reciprocal (single per-row EUP op); keeps row sums == 1 to f32
    # precision, unlike the approximate vrcp which failed the 1e-3 check.
    w = ex * pl.reciprocal(denom)
    weights_ref[...] = w.astype(weights_ref.dtype)         # (tb, S)

    # ---- weighted sum over S: batched (1,S) @ (S,H) on the MXU --------------
    out = jnp.einsum('bqs,bsh->bqh', w[:, None, :], x,
                     preferred_element_type=jnp.float32)   # (tb, 1, H)
    out_ref[...] = out[:, 0, :].astype(out_ref.dtype)      # (tb, H)


def _pick_batch_block(B, S, H, budget_bytes=8 << 20):
    """Largest batch tile that (a) divides B, (b) is B itself or a multiple of 8
    (sublane rule for the 2-D output blocks), and (c) keeps two double-buffered
    f32 x-blocks under ~8 MiB (fits v5e scoped VMEM and v7x's smaller VMEM)."""
    bytes_per_row = 2 * S * H * 4          # double-buffered f32 rows of x
    cap = max(1, budget_bytes // bytes_per_row)
    if cap >= B:
        return B
    tb = (min(cap, B) // 8) * 8
    while tb >= 8:
        if B % tb == 0:
            return tb
        tb -= 8
    return B                                # tiny-budget fallback: single block


def self_attention(x, w1, b1, w2, b2, *, batch_block=None):
    B, S, H = x.shape
    P = w1.shape[1]
    w2_row = w2.reshape(1, P)               # (P, 1) -> lane-resident (1, P) row
    b2_s = b2.reshape(1, 1)                 # SMEM scalar

    tb = batch_block or _pick_batch_block(B, S, H)
    grid = (B // tb,)

    flops = 2 * B * S * H * P + 2 * B * S * P + 2 * B * S * H
    bytes_accessed = 4 * (B * S * H + H * P + 2 * P + 1 + B * H + B * S)

    return pl.pallas_call(
        self_attention_kernel,
        grid=grid,
        in_specs=[
            pl.BlockSpec((tb, S, H), lambda i: (i, 0, 0)),       # x: batch-tiled
            pl.BlockSpec((H, P), lambda i: (0, 0)),              # w1: resident
            pl.BlockSpec((1, P), lambda i: (0, 0)),              # b1
            pl.BlockSpec((1, P), lambda i: (0, 0)),              # w2 row
            pl.BlockSpec(memory_space=pltpu.MemorySpace.SMEM),   # b2 scalar
        ],
        out_specs=(
            pl.BlockSpec((tb, H), lambda i: (i, 0)),             # outputs
            pl.BlockSpec((tb, S), lambda i: (i, 0)),             # weights
        ),
        out_shape=(jax.ShapeDtypeStruct((B, H), x.dtype),
                   jax.ShapeDtypeStruct((B, S), x.dtype)),
        compiler_params=pltpu.CompilerParams(
            dimension_semantics=("parallel",)),
        cost_estimate=pl.CostEstimate(
            flops=flops, transcendentals=B * S, bytes_accessed=bytes_accessed),
    )(x, w1, b1, w2_row, b2_s)


def reference(x, w1, b1, w2, b2):
    h = jnp.maximum(jnp.einsum('bsh,hk->bsk', x, w1) + b1[0], 0.0)
    energy = (jnp.einsum('bsk,ko->bso', h, w2) + b2[0]).squeeze(-1)
    weights = jax.nn.softmax(energy, axis=1)
    outputs = jnp.sum(x * weights[:, :, None], axis=1)
    return outputs, weights


if __name__ == "__main__":
    B, S, H, P = 2, 8, 32, 64    # batch, seq, hidden_dim, projection width

    key = jax.random.PRNGKey(0)
    kx, k1, k2, k3, k4 = jax.random.split(key, 5)

    x = jax.random.normal(kx, (B, S, H), dtype=jnp.float32)

    # Deterministic init mimicking nn.Linear default (uniform ±1/sqrt(fan_in)).
    bound1 = 1.0 / jnp.sqrt(jnp.float32(H))
    w1 = jax.random.uniform(k1, (H, P), jnp.float32, -bound1, bound1)
    b1 = jax.random.uniform(k2, (1, P), jnp.float32, -bound1, bound1)
    bound2 = 1.0 / jnp.sqrt(jnp.float32(P))
    w2 = jax.random.uniform(k3, (P, 1), jnp.float32, -bound2, bound2)
    b2 = jax.random.uniform(k4, (1, 1), jnp.float32, -bound2, bound2)

    outputs, weights = self_attention(x, w1, b1, w2, b2)
    jax.block_until_ready((outputs, weights))

    ref_out, ref_w = reference(x, w1, b1, w2, b2)
    assert outputs.shape == (B, H) and weights.shape == (B, S)
    # bf16 MXU operands => small (<1e-2) deviation vs the all-f32 reference;
    # softmax stats, normalization and accumulation remain exact f32.
    assert jnp.allclose(outputs, ref_out, atol=2e-2, rtol=2e-2)
    assert jnp.allclose(weights, ref_w, atol=2e-2, rtol=2e-2)
    assert jnp.allclose(jnp.sum(weights, axis=1), 1.0, atol=1e-3)

    print("KERNEL_OK")
</pallas_src>

<mosaic_0001>
module attributes {stable_mosaic.version = 11 : i64} {
  func.func @self_attention_kernel(%arg0: i32, %arg1: memref<2x8x32xf32, #tpu.memory_space<vmem>>, %arg2: memref<32x64xf32, #tpu.memory_space<vmem>>, %arg3: memref<1x64xf32, #tpu.memory_space<vmem>>, %arg4: memref<1x64xf32, #tpu.memory_space<vmem>>, %arg5: memref<1x1xf32, #tpu.memory_space<smem>>, %arg6: memref<2x32xf32, #tpu.memory_space<vmem>>, %arg7: memref<2x8xf32, #tpu.memory_space<vmem>>) attributes {dimension_semantics = [#tpu.dimension_semantics<parallel>], iteration_bounds = array<i64: 1>, scalar_prefetch = 0 : i64, scratch_operands = 0 : i64, tpu.core_type = #tpu.core_type<tc>, window_params = [{transform_indices = @transform_0, window_bounds = array<i64: 2, 8, 32>}, {pipeline_mode = #tpu.pipeline_mode<synchronous>, transform_indices = @transform_1, window_bounds = array<i64: 32, 64>}, {pipeline_mode = #tpu.pipeline_mode<synchronous>, transform_indices = @transform_2, window_bounds = array<i64: 1, 64>}, {pipeline_mode = #tpu.pipeline_mode<synchronous>, transform_indices = @transform_3, window_bounds = array<i64: 1, 64>}, {transform_indices = @transform_4, window_bounds = array<i64: 1, 1>}, {transform_indices = @transform_5, window_bounds = array<i64: 2, 32>}, {transform_indices = @transform_6, window_bounds = array<i64: 2, 8>}]} {
    %c0 = arith.constant 0 : index
    %c0_0 = arith.constant 0 : index
    %c0_1 = arith.constant 0 : index
    %0 = vector.load %arg1[%c0, %c0_0, %c0_1] : memref<2x8x32xf32, #tpu.memory_space<vmem>>, vector<2x8x32xf32>
    %1 = vector.shape_cast %0 : vector<2x8x32xf32> to vector<16x32xf32>
    %2 = arith.truncf %1 : vector<16x32xf32> to vector<16x32xbf16>
    %c0_2 = arith.constant 0 : index
    %c0_3 = arith.constant 0 : index
    %3 = vector.load %arg2[%c0_2, %c0_3] : memref<32x64xf32, #tpu.memory_space<vmem>>, vector<32x64xf32>
    %4 = arith.truncf %3 : vector<32x64xf32> to vector<32x64xbf16>
    %cst = arith.constant dense<0.000000e+00> : vector<16x64xf32>
    %5 = tpu.matmul %2, %4, %cst {dimension_numbers = #tpu.dot_dimension_numbers<[1], [0], [0], [1], [0, 0, 1, 1], [], []>} : vector<16x32xbf16>, vector<32x64xbf16>, vector<16x64xf32> -> vector<16x64xf32>
    %c0_4 = arith.constant 0 : index
    %c0_5 = arith.constant 0 : index
    %6 = vector.load %arg3[%c0_4, %c0_5] : memref<1x64xf32, #tpu.memory_space<vmem>>, vector<1x64xf32>
    %7 = vector.broadcast %6 : vector<1x64xf32> to vector<16x64xf32>
    %8 = arith.addf %5, %7 : vector<16x64xf32>
    %cst_6 = arith.constant 0.000000e+00 : f32
    %9 = vector.broadcast %cst_6 : f32 to vector<16x64xf32>
    %10 = arith.maximumf %8, %9 : vector<16x64xf32>
    %c0_7 = arith.constant 0 : index
    %c0_8 = arith.constant 0 : index
    %11 = vector.load %arg4[%c0_7, %c0_8] : memref<1x64xf32, #tpu.memory_space<vmem>>, vector<1x64xf32>
    %12 = vector.broadcast %11 : vector<1x64xf32> to vector<16x64xf32>
    %13 = arith.mulf %10, %12 : vector<16x64xf32>
    %14 = vector.shape_cast %13 : vector<16x64xf32> to vector<2x8x64xf32>
    %cst_9 = arith.constant dense<0.000000e+00> : vector<2x8xf32>
    %15 = vector.multi_reduction <add>, %14, %cst_9 [2] : vector<2x8x64xf32> to vector<2x8xf32>
    %c0_10 = arith.constant 0 : index
    %c0_11 = arith.constant 0 : index
    %16 = memref.load %arg5[%c0_10, %c0_11] : memref<1x1xf32, #tpu.memory_space<smem>>
    %17 = vector.broadcast %16 : f32 to vector<2x8xf32>
    %18 = arith.addf %15, %17 : vector<2x8xf32>
    %cst_12 = arith.constant dense<0xFF800000> : vector<2xf32>
    %19 = vector.multi_reduction <maximumf>, %18, %cst_12 [1] : vector<2x8xf32> to vector<2xf32>
    %20 = vector.shape_cast %19 : vector<2xf32> to vector<2x1xf32>
    %21 = vector.broadcast %20 : vector<2x1xf32> to vector<2x8xf32>
    %22 = arith.subf %18, %21 : vector<2x8xf32>
    %23 = math.exp %22 : vector<2x8xf32>
    %cst_13 = arith.constant dense<0.000000e+00> : vector<2xf32>
    %24 = vector.multi_reduction <add>, %23, %cst_13 [1] : vector<2x8xf32> to vector<2xf32>
    %25 = vector.shape_cast %24 : vector<2xf32> to vector<2x1xf32>
    %26 = tpu.reciprocal %25 : vector<2x1xf32> -> vector<2x1xf32>
    %27 = vector.broadcast %26 : vector<2x1xf32> to vector<2x8xf32>
    %28 = arith.mulf %23, %27 : vector<2x8xf32>
    %c0_14 = arith.constant 0 : index
    %c0_15 = arith.constant 0 : index
    %29 = vector.load %arg7[%c0_14, %c0_15] : memref<2x8xf32, #tpu.memory_space<vmem>>, vector<2x8xf32>
    tpu.vector_store %arg7[%c0_14, %c0_15], %28 {strides = array<i32>} : memref<2x8xf32, #tpu.memory_space<vmem>>, vector<2x8xf32>,
    %30 = vector.shape_cast %28 : vector<2x8xf32> to vector<2x1x8xf32>
    "tpu.trace_start"() <{level = 10 : i32, message = "bqs,bsh->bqh"}> : () -> ()
    %cst_16 = arith.constant dense<0.000000e+00> : vector<2x1x32xf32>
    %31 = tpu.matmul %30, %0, %cst_16 {dimension_numbers = #tpu.dot_dimension_numbers<[2], [1], [1], [2], [0, 0, 0, 1, 1, 2], [0], [0]>} : vector<2x1x8xf32>, vector<2x8x32xf32>, vector<2x1x32xf32> -> vector<2x1x32xf32>
    "tpu.trace_stop"() : () -> ()
    %32 = vector.shape_cast %31 : vector<2x1x32xf32> to vector<2x32xf32>
    %c0_17 = arith.constant 0 : index
    %c0_18 = arith.constant 0 : index
    %33 = vector.load %arg6[%c0_17, %c0_18] : memref<2x32xf32, #tpu.memory_space<vmem>>, vector<2x32xf32>
    tpu.vector_store %arg6[%c0_17, %c0_18], %32 {strides = array<i32>} : memref<2x32xf32, #tpu.memory_space<vmem>>, vector<2x32xf32>,
    return
  }
  func.func @transform_0(%arg0: i32) -> (i32, i32, i32) {
    %c0_i32 = arith.constant 0 : i32
    %c0_i32_0 = arith.constant 0 : i32
    %c0_i32_1 = arith.constant 0 : i32
    return %arg0, %c0_i32, %c0_i32_0 : i32, i32, i32
  }
  func.func @transform_1(%arg0: i32) -> (i32, i32) {
    %c0_i32 = arith.constant 0 : i32
    %c0_i32_0 = arith.constant 0 : i32
    %c0_i32_1 = arith.constant 0 : i32
    return %c0_i32, %c0_i32_0 : i32, i32
  }
  func.func @transform_2(%arg0: i32) -> (i32, i32) {
    %c0_i32 = arith.constant 0 : i32
    %c0_i32_0 = arith.constant 0 : i32
    %c0_i32_1 = arith.constant 0 : i32
    return %c0_i32, %c0_i32_0 : i32, i32
  }
  func.func @transform_3(%arg0: i32) -> (i32, i32) {
    %c0_i32 = arith.constant 0 : i32
    %c0_i32_0 = arith.constant 0 : i32
    %c0_i32_1 = arith.constant 0 : i32
    return %c0_i32, %c0_i32_0 : i32, i32
  }
  func.func @transform_4(%arg0: i32) -> (i32, i32) {
    %c0_i32 = arith.constant 0 : i32
    %c0_i32_0 = arith.constant 0 : i32
    %c0_i32_1 = arith.constant 0 : i32
    return %c0_i32, %c0_i32_0 : i32, i32
  }
  func.func @transform_5(%arg0: i32) -> (i32, i32) {
    %c0_i32 = arith.constant 0 : i32
    %c0_i32_0 = arith.constant 0 : i32
    return %arg0, %c0_i32 : i32, i32
  }
  func.func @transform_6(%arg0: i32) -> (i32, i32) {
    %c0_i32 = arith.constant 0 : i32
    %c0_i32_0 = arith.constant 0 : i32
    return %arg0, %c0_i32 : i32, i32
  }
}

</mosaic_0001>

<llo_original>
// kernel: tpu_custom_call.1
$region0: #{tpu_custom_call.1}
  #allocation0 [shape = 'u32[]', space=smem, size = 0x4, offset = 0x4, fixed_abs, tag = 'smem constant byte address 0x4 - core index']
  #allocation1 [shape = 'u32[144,128]{1,0:T(1,128)}', space=vmem, size = 0x12000, scoped, tag = 'internal scratch']
  #allocation2 [shape = 'f32[1,1]{1,0:T(1,128)S(6)}', space=smem, size = 0x200, scoped, tag = 'scoped memory for tpu_custom_call.1']
  %s0 = inlined_call_operand.hbm [shape: f32[2,8,32], index: 0, kind: input, shape index: {}]
  %s1 = inlined_call_operand.hbm [shape: f32[32,64], index: 1, kind: input, shape index: {}]
  %s2 = inlined_call_operand.vmem [shape: f32[1,64], index: 2, kind: input, shape index: {}]
  %s3 = inlined_call_operand.vmem [shape: f32[1,64], index: 3, kind: input, shape index: {}]
  %s4 = inlined_call_operand.<no memory space> [shape: f32[1,1], index: 4, kind: input, shape index: {}]
  %s5 = inlined_call_operand.hbm [shape: f32[2,32], index: 5, kind: output, shape index: {0}]
  %s6 = inlined_call_operand.hbm [shape: f32[2,8], index: 6, kind: output, shape index: {1}]
  %7 = xla_tuple %s5, %s6
  %s8 = sld [smem:[#allocation0]]
  $region46: #{tpu_custom_call.1} parent=0
    _
  %s10 = ssub.s32 1, %s8
  %s11 = scalar_select 0, %s10, %s8
  %12 = sst [smem:[#allocation2]] %s4
  $region1: #{tpu_custom_call.1} parent=0
    #allocation3 [shape = 'u8[8192]{0}', space=vmem, size = 0x2000, scoped, tag = 'input window, operand 0, single buffered']
    #allocation4 [shape = 's32[1]{0}', space=sflag, size = 0x4, scoped, tag = 'scoped memory for tpu_custom_call.1']
    #allocation5 [shape = 's32[1]{0}', space=sflag, size = 0x4, scoped, tag = 'scoped memory for tpu_custom_call.1']
    #allocation6 [shape = 'u8[16384]{0}', space=vmem, size = 0x4000, scoped, tag = 'input window, operand 1, single buffered']
    #allocation7 [shape = 's32[1]{0}', space=sflag, size = 0x4, scoped, tag = 'scoped memory for tpu_custom_call.1']
    #allocation8 [shape = 'u8[1024]{0}', space=vmem, size = 0x400, scoped, tag = 'output window, operand 0, single buffered']
    #allocation9 [shape = 'u8[1024]{0}', space=vmem, size = 0x400, scoped, tag = 'output window, operand 1, single buffered']
    #allocation10 [shape = 's32[1]{0}', space=sflag, size = 0x4, scoped, tag = 'scoped memory for tpu_custom_call.1']
    %13 = vsyncpa [#allocation4], 0
    %14 = vsyncpa [#allocation7], 0
    %15 = vsyncpa [#allocation5], 0
    %16 = vsyncpa [#allocation10], 0
    // Predicated region
    $region2: #{tpu_custom_call.1} parent=1 // pred_check
      _
    $region3: #{tpu_custom_call.1} parent=1 // pred_check_branch
      %18 = sbr.rel (0) target = $region5
    $region4: #{tpu_custom_call.1} parent=1 // pred_region
      %s20 = ssub.s32 256, 256
      %21 = vsyncadd [#allocation4], %s20
      %s22 = sshll.u32 [#allocation3], 4
      %s23 = int_to_ptr.vmem [resolvable:$true] %s22
      %28 = dma.hbm_to_vmem [thread:$0]  %s0, 256, %s23, [#allocation4], 128, 128, 8
    $region5: #{tpu_custom_call.1} parent=1 // pred_fallthru
      _
    // Predicated region
    $region6: #{tpu_custom_call.1} parent=1 // pred_check
      _
    $region7: #{tpu_custom_call.1} parent=1 // pred_check_branch
      %30 = sbr.rel (0) target = $region9
    $region8: #{tpu_custom_call.1} parent=1 // pred_region
      %s32 = ssub.s32 512, 512
      %33 = vsyncadd [#allocation7], %s32
      %s34 = sshll.u32 [#allocation6], 4
      %s35 = int_to_ptr.vmem [resolvable:$true] %s34
      %40 = dma.hbm_to_vmem [thread:$0]  %s1, 512, %s35, [#allocation7], 128, 128, 8
    $region9: #{tpu_custom_call.1} parent=1 // pred_fallthru
      _
    // Predicated region
    $region10: #{tpu_custom_call.1} parent=1 // pred_check
      _
    $region11: #{tpu_custom_call.1} parent=1 // pred_check_branch
      %42 = sbr.rel (0) target = $region13
    $region12: #{tpu_custom_call.1} parent=1 // pred_region
      _
    $region13: #{tpu_custom_call.1} parent=1 // pred_fallthru
      _
    // Predicated region
    $region14: #{tpu_custom_call.1} parent=1 // pred_check
      _
    $region15: #{tpu_custom_call.1} parent=1 // pred_check_branch
      %44 = sbr.rel (0) target = $region17
    $region16: #{tpu_custom_call.1} parent=1 // pred_region
      _
    $region17: #{tpu_custom_call.1} parent=1 // pred_fallthru
      _
    // Predicated region
    $region18: #{tpu_custom_call.1} parent=1 // pred_check
      _
    $region19: #{tpu_custom_call.1} parent=1 // pred_check_branch
      %46 = sbr.rel (0) target = $region21
    $region20: #{tpu_custom_call.1} parent=1 // pred_region
      _
    $region21: #{tpu_custom_call.1} parent=1 // pred_fallthru
      _
    // Predicated region
    $region22: #{tpu_custom_call.1} parent=1 // pred_check
      _
    $region23: #{tpu_custom_call.1} parent=1 // pred_check_branch
      %48 = sbr.rel (0) target = $region25
    $region24: #{tpu_custom_call.1} parent=1 // pred_region
      %49 = dma.done [#allocation4], 256
    $region25: #{tpu_custom_call.1} parent=1 // pred_fallthru
      _
    // Predicated region
    $region26: #{tpu_custom_call.1} parent=1 // pred_check
      _
    $region27: #{tpu_custom_call.1} parent=1 // pred_check_branch
      %51 = sbr.rel (0) target = $region29
    $region28: #{tpu_custom_call.1} parent=1 // pred_region
      %52 = dma.done [#allocation7], 512
    $region29: #{tpu_custom_call.1} parent=1 // pred_fallthru
      _
    %v54 = vld [vmem:[#allocation3] sm:$0xff]
    %v55 = vld [vmem:[#allocation3 + $0x8] sm:$0xff]
    %v56 = vpack.c.bf16 %v55, %v54
    %v57 = vld [vmem:[#allocation6] sm:$0xff]
    %v58 = vld [vmem:[#allocation6 + $0x8] sm:$0xff]
    %v59 = vld [vmem:[#allocation6 + $0x10] sm:$0xff]
    %v60 = vld [vmem:[#allocation6 + $0x18] sm:$0xff]
    %v61 = vpack.c.bf16 %v58, %v57
    %v62 = vpack.c.bf16 %v60, %v59
    %v63 = vld [vmem:[%s2] sm:$0x1]
    %v65 = vlaneseq
    %v66 = vshrl.u32 %v65, 7
    %v67 = vsub.s32 0, %v66
    %v68 = vrot.slane %v63, %v67
    %vm70 = vcmask 261120
    %v72 = vsel %vm70, %v56, 0
    %74 = vmatprep.subr.bf16.mxu0 0
    %75 = vmatpush1.bf16.msra.mxu0 %v61
    %76 = vmatprep.subr.bf16.mxu0 0
    %77 = vmatpush1.bf16.msra.mxu0 %v62
    %78 = vmatprep.subr.bf16.mxu0 0
    %79 = vmatpush1.bf16.msra.mxu0 0
    %80 = vmatprep.subr.bf16.mxu0 0
    %81 = vmatpush1.bf16.msra.mxu0 0
    %82 = vmatprep.subr.bf16.mxu0 0
    %83 = vmatpush1.bf16.msra.mxu0 0
    %84 = vmatprep.subr.bf16.mxu0 0
    %85 = vmatpush1.bf16.msra.mxu0 0
    %86 = vmatprep.subr.bf16.mxu0 0
    %87 = vmatpush1.bf16.msra.mxu0 0
    %88 = vmatprep.subr.bf16.mxu0 0
    %89 = vmatpush1.bf16.msra.mxu0 0
    %90 = vmatprep.subr.bf16.mxu0 0
    %91 = vmatpush1.bf16.msra.mxu0 0
    %92 = vmatprep.subr.bf16.mxu0 0
    %93 = vmatpush1.bf16.msra.mxu0 0
    %94 = vmatprep.subr.bf16.mxu0 0
    %95 = vmatpush1.bf16.msra.mxu0 0
    %96 = vmatprep.subr.bf16.mxu0 0
    %97 = vmatpush1.bf16.msra.mxu0 0
    %98 = vmatprep.subr.bf16.mxu0 0
    %99 = vmatpush1.bf16.msra.mxu0 0
    %100 = vmatprep.subr.bf16.mxu0 0
    %101 = vmatpush1.bf16.msra.mxu0 0
    %102 = vmatprep.subr.bf16.mxu0 0
    %103 = vmatpush1.bf16.msra.mxu0 0
    %104 = vmatprep.subr.bf16.mxu0 0
    %105 = vmatpush1.bf16.msra.mxu0 0
    %106 = vmatprep.mubr.bf16.mxu0 0
    %107 = vmatmul.mubr.bf16.gmra.mrb[0].mxu0 %v72
    %v108 = vpop.f32.mrb[0].mxu0
    %v109 = vadd.f32 %v68, %v108
    %v110 = vpop.f32.mrb[0].mxu0
    %v111 = vpop.f32.mrb[0].mxu0
    %v112 = vadd.f32 %v68, %v111
    %v113 = vpop.f32.mrb[0].mxu0
    %114 = vdwg.mxu0
    %v115 = vmax.f32 %v109, 0.0
    %v116 = vmax.f32 %v112, 0.0
    %v117 = vld [vmem:[%s3] sm:$0x1]
    %v119 = vlaneseq
    %v120 = vshrl.u32 %v119, 7
    %v121 = vsub.s32 0, %v120
    %v122 = vrot.slane %v117, %v121
    %v124 = vmul.f32 %v115, %v122
    %v125 = vmul.f32 %v116, %v122
    %vm126 = vcmask 523264
    %v127 = vsel %vm126, %v124, 0.0
    %128 = vadd.xlane.f32.xlu0 %v127
    %v129 = vpop.xlane.xlu0 %128
    %v130 = vsel %vm126, %v125, 0.0
    %131 = vadd.xlane.f32.xlu0 %v130
    %v132 = vpop.xlane.xlu0 %131
    %s133 = sld [smem:[#allocation2]]
    %v134 = vstv %s133
    %v135 = vadd.f32 %v129, %v134
    %v136 = vadd.f32 %v132, %v134
    %v139 = vlaneseq
    %v140 = vand.u32 %v139, 127
    %v141 = vlaneseq
    %v142 = vshrl.u32 %v141, 7
    %v143 = vsub.s32 %v140, %v142
    %v144 = vrot.slane %v135, %v143
    %v145 = vlaneseq
    %v146 = vshrl.u32 %v145, 7
    %v147 = vsub.s32 %v140, %v146
    %v148 = vrot.slane %v136, %v147
    %vm149 = vcmask 1041409
    %v150 = vsel %vm149, %v148, %v144
    %vm152 = vcmask 58368
    %v153 = vsel %vm152, %v150, -inf
    %154 = vmax.xlane.f32.xlu0 %v153
    %v155 = vpop.xlane.xlu0 %154
    %v157 = vlaneseq
    %v158 = vshrl.u32 %v157, 7
    %v159 = vsub.s32 0, %v158
    %v160 = vrot.slane %v155, %v159
    %v161 = vlaneseq
    %v162 = vshrl.u32 %v161, 7
    %v163 = vsub.s32 1, %v162
    %v164 = vrot.slane %v155, %v163
    %v167 = vsub.f32 %v135, %v160
    %v168 = vsub.f32 %v136, %v164
    %v169 = vmul.f32 %v167, 1.442695
    %v170 = vpow.pop %v169
    %v171 = vmul.f32 %v168, 1.442695
    %v172 = vpow.pop %v171
    %175 = vset.pattern.permute.xlu0 0
    %176 = vperm.xlu0 %175, %v170
    %v177 = vpop.permute.xlu0 %176
    %178 = vset.pattern.permute.xlu0 0
    %179 = vperm.xlu0 %178, %v172
    %v180 = vpop.permute.xlu0 %179
    %v181 = vlaneseq
    %v182 = vshrl.u32 %v181, 7
    %v183 = vsub.s32 %v140, %v182
    %v184 = vrot.slane %v177, %v183
    %v185 = vlaneseq
    %v186 = vshrl.u32 %v185, 7
    %v187 = vsub.s32 %v140, %v186
    %v188 = vrot.slane %v180, %v187
    %v189 = vsel %vm149, %v188, %v184
    %v191 = vsel %vm152, %v189, 0.0
    %192 = vadd.xlane.f32.xlu0 %v191
    %v193 = vpop.xlane.xlu0 %192
    %v194 = vrcp.pop %v193
    %v196 = vlaneseq
    %v197 = vshrl.u32 %v196, 7
    %v198 = vsub.s32 0, %v197
    %v199 = vrot.slane %v194, %v198
    %v200 = vlaneseq
    %v201 = vshrl.u32 %v200, 7
    %v202 = vsub.s32 1, %v201
    %v203 = vrot.slane %v194, %v202
    %v206 = vmul.f32 %v170, %v199
    %v207 = vmul.f32 %v172, %v203
    %210 = vset.pattern.permute.xlu0 0
    %211 = vperm.xlu0 %210, %v206
    %v212 = vpop.permute.xlu0 %211
    %213 = vset.pattern.permute.xlu0 0
    %214 = vperm.xlu0 %213, %v207
    %v215 = vpop.permute.xlu0 %214
    %v216 = vlaneseq
    %v217 = vshrl.u32 %v216, 7
    %v218 = vsub.s32 %v140, %v217
    %v219 = vrot.slane %v212, %v218
    %v220 = vlaneseq
    %v221 = vshrl.u32 %v220, 7
    %v222 = vsub.s32 %v140, %v221
    %v223 = vrot.slane %v215, %v222
    %v224 = vsel %vm149, %v223, %v219
    %226 = vst.msk [vmem:[#allocation9] sm:$0x3] %vm152, %v224
    %vm227 = vcmask 64512
    %v228 = vsel %vm227, %v219, 0
    %230 = vmatprep.subr.mxu0 0.0
    %231 = vmatpush1.msra.mxu0 %v54
    %232 = vmatprep.subr.mxu0 0.0
    %233 = vmatpush1.msra.mxu0 0.0
    %234 = vmatprep.subr.mxu0 0.0
    %235 = vmatpush1.msra.mxu0 0.0
    %236 = vmatprep.subr.mxu0 0.0
    %237 = vmatpush1.msra.mxu0 0.0
    %238 = vmatprep.subr.mxu0 0.0
    %239 = vmatpush1.msra.mxu0 0.0
    %240 = vmatprep.subr.mxu0 0.0
    %241 = vmatpush1.msra.mxu0 0.0
    %242 = vmatprep.subr.mxu0 0.0
    %243 = vmatpush1.msra.mxu0 0.0
    %244 = vmatprep.subr.mxu0 0.0
    %245 = vmatpush1.msra.mxu0 0.0
    %246 = vmatprep.subr.mxu0 0.0
    %247 = vmatpush1.msra.mxu0 0.0
    %248 = vmatprep.subr.mxu0 0.0
    %249 = vmatpush1.msra.mxu0 0.0
    %250 = vmatprep.subr.mxu0 0.0
    %251 = vmatpush1.msra.mxu0 0.0
    %252 = vmatprep.subr.mxu0 0.0
    %253 = vmatpush1.msra.mxu0 0.0
    %254 = vmatprep.subr.mxu0 0.0
    %255 = vmatpush1.msra.mxu0 0.0
    %256 = vmatprep.subr.mxu0 0.0
    %257 = vmatpush1.msra.mxu0 0.0
    %258 = vmatprep.subr.mxu0 0.0
    %259 = vmatpush1.msra.mxu0 0.0
    %260 = vmatprep.subr.mxu0 0.0
    %261 = vmatpush1.msra.mxu0 0.0
    %262 = vmatprep.subr.mxu0 0.0
    %263 = vmatpush1.msra.mxu0 0.0
    %264 = vmatprep.subr.mxu0 0.0
    %265 = vmatpush1.msra.mxu0 0.0
    %266 = vmatprep.subr.mxu0 0.0
    %267 = vmatpush1.msra.mxu0 0.0
    %268 = vmatprep.subr.mxu0 0.0
    %269 = vmatpush1.msra.mxu0 0.0
    %270 = vmatprep.subr.mxu0 0.0
    %271 = vmatpush1.msra.mxu0 0.0
    %272 = vmatprep.subr.mxu0 0.0
    %273 = vmatpush1.msra.mxu0 0.0
    %274 = vmatprep.subr.mxu0 0.0
    %275 = vmatpush1.msra.mxu0 0.0
    %276 = vmatprep.subr.mxu0 0.0
    %277 = vmatpush1.msra.mxu0 0.0
    %278 = vmatprep.subr.mxu0 0.0
    %279 = vmatpush1.msra.mxu0 0.0
    %280 = vmatprep.subr.mxu0 0.0
    %281 = vmatpush1.msra.mxu0 0.0
    %282 = vmatprep.subr.mxu0 0.0
    %283 = vmatpush1.msra.mxu0 0.0
    %284 = vmatprep.subr.mxu0 0.0
    %285 = vmatpush1.msra.mxu0 0.0
    %286 = vmatprep.subr.mxu0 0.0
    %287 = vmatpush1.msra.mxu0 0.0
    %288 = vmatprep.subr.mxu0 0.0
    %289 = vmatpush1.msra.mxu0 0.0
    %290 = vmatprep.subr.mxu0 0.0
    %291 = vmatpush1.msra.mxu0 0.0
    %292 = vmatprep.subr.mxu0 0.0
    %293 = vmatpush1.msra.mxu0 0.0
    %294 = vmatprep.mubr.f32.mxu0 0.0
    %295 = vmatmul.mubr.f32.gmra.mrb[0].mxu0 %v228
    %v296 = vpop.f32.mrb[0].mxu0
    %v297 = vadd.f32 0.0, %v296
    %v298 = vpop.f32.mrb[0].mxu0
    %299 = vdwg.mxu0
    %v300 = vsel %vm227, %v223, 0
    %302 = vmatprep.subr.mxu0 0.0
    %303 = vmatpush1.msra.mxu0 %v55
    %304 = vmatprep.subr.mxu0 0.0
    %305 = vmatpush1.msra.mxu0 0.0
    %306 = vmatprep.subr.mxu0 0.0
    %307 = vmatpush1.msra.mxu0 0.0
    %308 = vmatprep.subr.mxu0 0.0
    %309 = vmatpush1.msra.mxu0 0.0
    %310 = vmatprep.subr.mxu0 0.0
    %311 = vmatpush1.msra.mxu0 0.0
    %312 = vmatprep.subr.mxu0 0.0
    %313 = vmatpush1.msra.mxu0 0.0
    %314 = vmatprep.subr.mxu0 0.0
    %315 = vmatpush1.msra.mxu0 0.0
    %316 = vmatprep.subr.mxu0 0.0
    %317 = vmatpush1.msra.mxu0 0.0
    %318 = vmatprep.subr.mxu0 0.0
    %319 = vmatpush1.msra.mxu0 0.0
    %320 = vmatprep.subr.mxu0 0.0
    %321 = vmatpush1.msra.mxu0 0.0
    %322 = vmatprep.subr.mxu0 0.0
    %323 = vmatpush1.msra.mxu0 0.0
    %324 = vmatprep.subr.mxu0 0.0
    %325 = vmatpush1.msra.mxu0 0.0
    %326 = vmatprep.subr.mxu0 0.0
    %327 = vmatpush1.msra.mxu0 0.0
    %328 = vmatprep.subr.mxu0 0.0
    %329 = vmatpush1.msra.mxu0 0.0
    %330 = vmatprep.subr.mxu0 0.0
    %331 = vmatpush1.msra.mxu0 0.0
    %332 = vmatprep.subr.mxu0 0.0
    %333 = vmatpush1.msra.mxu0 0.0
    %334 = vmatprep.subr.mxu0 0.0
    %335 = vmatpush1.msra.mxu0 0.0
    %336 = vmatprep.subr.mxu0 0.0
    %337 = vmatpush1.msra.mxu0 0.0
    %338 = vmatprep.subr.mxu0 0.0
    %339 = vmatpush1.msra.mxu0 0.0
    %340 = vmatprep.subr.mxu0 0.0
    %341 = vmatpush1.msra.mxu0 0.0
    %342 = vmatprep.subr.mxu0 0.0
    %343 = vmatpush1.msra.mxu0 0.0
    %344 = vmatprep.subr.mxu0 0.0
    %345 = vmatpush1.msra.mxu0 0.0
    %346 = vmatprep.subr.mxu0 0.0
    %347 = vmatpush1.msra.mxu0 0.0
    %348 = vmatprep.subr.mxu0 0.0
    %349 = vmatpush1.msra.mxu0 0.0
    %350 = vmatprep.subr.mxu0 0.0
    %351 = vmatpush1.msra.mxu0 0.0
    %352 = vmatprep.subr.mxu0 0.0
    %353 = vmatpush1.msra.mxu0 0.0
    %354 = vmatprep.subr.mxu0 0.0
    %355 = vmatpush1.msra.mxu0 0.0
    %356 = vmatprep.subr.mxu0 0.0
    %357 = vmatpush1.msra.mxu0 0.0
    %358 = vmatprep.subr.mxu0 0.0
    %359 = vmatpush1.msra.mxu0 0.0
    %360 = vmatprep.subr.mxu0 0.0
    %361 = vmatpush1.msra.mxu0 0.0
    %362 = vmatprep.subr.mxu0 0.0
    %363 = vmatpush1.msra.mxu0 0.0
    %364 = vmatprep.subr.mxu0 0.0
    %365 = vmatpush1.msra.mxu0 0.0
    %366 = vmatprep.mubr.f32.mxu0 0.0
    %367 = vmatmul.mubr.f32.gmra.mrb[0].mxu0 %v300
    %v368 = vpop.f32.mrb[0].mxu0
    %v369 = vadd.f32 0.0, %v368
    %v370 = vpop.f32.mrb[0].mxu0
    %371 = vdwg.mxu0
    %v374 = vrot.slane %v369, 7
    %v375 = vsel %vm149, %v374, %v297
    %vm377 = vcmask 254976
    %378 = vst.msk [vmem:[#allocation8] sm:$0x3] %vm377, %v375
    // Predicated region
    $region30: #{tpu_custom_call.1} parent=1 // pred_check
      _
    $region31: #{tpu_custom_call.1} parent=1 // pred_check_branch
      %380 = sbr.rel (0) target = $region33
    $region32: #{tpu_custom_call.1} parent=1 // pred_region
      %s382 = ssub.s32 32, 32
      %383 = vsyncadd [#allocation5], %s382
      %s385 = sshll.u32 [#allocation8], 4
      %s386 = int_to_ptr.vmem [resolvable:$true] %s385
      %388 = dma.vmem_to_hbm [thread:$0]  %s386, 32, %s5, [#allocation5]
    $region33: #{tpu_custom_call.1} parent=1 // pred_fallthru
      _
    // Predicated region
    $region34: #{tpu_custom_call.1} parent=1 // pred_check
      _
    $region35: #{tpu_custom_call.1} parent=1 // pred_check_branch
      %390 = sbr.rel (0) target = $region37
    $region36: #{tpu_custom_call.1} parent=1 // pred_region
      %s392 = ssub.s32 32, 32
      %393 = vsyncadd [#allocation10], %s392
      %s395 = sshll.u32 [#allocation9], 4
      %s396 = int_to_ptr.vmem [resolvable:$true] %s395
      %398 = dma.vmem_to_hbm [thread:$0]  %s396, 32, %s6, [#allocation10]
    $region37: #{tpu_custom_call.1} parent=1 // pred_fallthru
      _
    // Predicated region
    $region38: #{tpu_custom_call.1} parent=1 // pred_check
      _
    $region39: #{tpu_custom_call.1} parent=1 // pred_check_branch
      %400 = sbr.rel (0) target = $region41
    $region40: #{tpu_custom_call.1} parent=1 // pred_region
      %401 = dma.done [#allocation5], 32
    $region41: #{tpu_custom_call.1} parent=1 // pred_fallthru
      _
    // Predicated region
    $region42: #{tpu_custom_call.1} parent=1 // pred_check
      _
    $region43: #{tpu_custom_call.1} parent=1 // pred_check_branch
      %403 = sbr.rel (0) target = $region45
    $region44: #{tpu_custom_call.1} parent=1 // pred_region
      %404 = dma.done [#allocation10], 32
    $region45: #{tpu_custom_call.1} parent=1 // pred_fallthru
      _
    %405 = vsyncpa [#allocation4], 1
    %406 = vsyncpa [#allocation7], 1
    %407 = vsyncpa [#allocation5], 1
    %408 = vsyncpa [#allocation10], 1

</llo_original>
